<compile_context>
chip_gen: v7x
topology: tpu7x:2x2x1
jax: 0.10.0
libtpu: 0.0.40
codegen_flags: <defaults>
</compile_context>

<pallas_src>
import functools

import jax
import jax.numpy as jnp
from jax import lax
from jax.experimental import pallas as pl
from jax.experimental.pallas import tpu as pltpu


# VMEM working-set budget used for auto-shrinking the pixel tile.  Sized for
# v7x (64 MiB physical, ~48 MiB usable scoped); v5e/v6e (128 MiB) have slack.
_VMEM_BUDGET_BYTES = 44 * 2**20


def _vmem_estimate(tp, F, C, M_pad, stream_itemsize):
    """Rough per-step VMEM working set (double-buffered I/O + banks + temps)."""
    cm = C * M_pad
    io = 2 * 2 * F * tp * stream_itemsize        # feat in + out, double-buffered
    mask = 2 * C * tp * 4                        # mask, double-buffered (f32)
    banks = 2 * 2 * cm * F * stream_itemsize     # mem + mem_T (2 buffers each)
    interm = 4 * cm * tp * 4                     # sim / e / wt f32 temporaries
    return io + mask + banks + interm


def _memory_kernel(feat_ref, mask_ref, mem_ref, mem_t_ref, out_ref, *, C, M, M_pad):
    """One (batch, pixel-tile) grid step.

    feat_ref  : [F, TP]        pixel features (pixels on lanes), stream dtype
    mask_ref  : [C, TP]        per-category mask
    mem_ref   : [C*M_pad, F]   flattened memory bank (grid-invariant)
    mem_t_ref : [F, C*M_pad]   pre-transposed bank (grid-invariant)
    out_ref   : [F, TP]        output features, stream dtype
    """
    tp = feat_ref.shape[-1]

    # Similarities for all categories in one wide MXU matmul: [C*M_pad, TP].
    # Bank / feat refs are used directly (no full-bank cast per step).
    sim = jnp.dot(mem_ref[...], feat_ref[...], preferred_element_type=jnp.float32)

    # Per-category softmax over the M memory slots.  M_pad % 8 == 0, so this
    # reshape only splits the sublane axis -> layout no-op.
    sim3 = sim.reshape(C, M_pad, tp)
    if M_pad != M:
        # Padded memory slots (zero rows) must not contribute to the softmax.
        slot = lax.broadcasted_iota(jnp.int32, (1, M_pad, 1), 1)
        sim3 = jnp.where(slot < M, sim3, jnp.float32(-1e30))

    m = jnp.max(sim3, axis=1, keepdims=True)                 # [C, 1, TP]
    e = jnp.exp(sim3 - m)                                    # [C, M_pad, TP]
    denom = jnp.sum(e, axis=1, keepdims=True)                # [C, 1, TP]

    # EUP approx reciprocal + one Newton step (frees VALU, ~f32 accuracy); the
    # category mask is folded into the [C, 1, TP] reciprocal instead of a full
    # [C, M_pad, TP] multiply.
    r = pl.reciprocal(denom, approx=True)
    r = r * (2.0 - denom * r)
    r = r * mask_ref[...].astype(jnp.float32)[:, None, :]

    wt = (e * r).reshape(C * M_pad, tp).astype(mem_t_ref.dtype)

    # Weighted read-out with the PRE-TRANSPOSED bank: out[f, p] =
    # sum_cm mem_T[f, cm] * wt[cm, p]  -- plain contraction, no per-step
    # XLU transpose of the bank inside the pipelined loop.
    out = jnp.dot(mem_t_ref[...], wt, preferred_element_type=jnp.float32)
    out_ref[...] = out.astype(out_ref.dtype)


def memory_forward(input_feat, input_mask, memory_feat, *, tile_p=2048,
                   stream_dtype=None):
    """Pallas implementation of Memory.forward (efficient_inference=False).

    input_feat : [b, F, h, w]
    input_mask : [b, C, h, w]
    memory_feat: [C, M, F]
    stream_dtype: dtype used for the HBM-streamed feat/out and the memory bank
                  (e.g. jnp.bfloat16 to halve the dominant HBM bytes).  Softmax
                  math stays in f32.  Default: input_feat.dtype.
    returns    : [b, F, h, w]  in stream_dtype
    """
    b, F, h, w = input_feat.shape
    C, M, Fm = memory_feat.shape
    assert Fm == F
    assert input_mask.shape == (b, C, h, w)

    HW = h * w
    stream_dtype = jnp.dtype(stream_dtype or input_feat.dtype)

    # Pad the memory-slot axis to a multiple of 8 (f32 sublane count) so the
    # in-kernel reshape is a true layout no-op; padded rows are zero and are
    # masked out of the softmax inside the kernel.
    M_pad = max(8, -(-M // 8) * 8)
    if M_pad != M:
        memory_feat = jnp.pad(memory_feat, ((0, 0), (0, M_pad - M), (0, 0)))

    # Pure reshapes only for the big activations -- no transposes, no pad copies.
    feat = input_feat.reshape(b, F, HW).astype(stream_dtype)
    mask = input_mask.reshape(b, C, HW)
    mem = memory_feat.reshape(C * M_pad, F).astype(stream_dtype)
    mem_t = mem.T                       # small one-time transposed copy [F, C*M_pad]

    # --- pixel tile selection -------------------------------------------------
    tp = min(tile_p, HW)
    if tp < HW:
        tp = max(128, (tp // 128) * 128)          # lane-dense block
    # Keep >= 2 pixel tiles when batch == 1 so both v7x TensorCores get work.
    if b == 1 and HW > 128:
        tp = min(tp, max(128, ((HW // 2) // 128) * 128))
    # Shrink until the double-buffered working set fits a v7x-safe VMEM budget.
    while tp > 128 and _vmem_estimate(tp, F, C, M_pad, stream_dtype.itemsize) \
            > _VMEM_BUDGET_BYTES:
        tp = max(128, ((tp // 2) // 128) * 128)

    est = _vmem_estimate(tp, F, C, M_pad, stream_dtype.itemsize)
    vmem_limit = int(min(max(32 * 2**20, int(1.25 * est)), 48 * 2**20))

    grid = (b, pl.cdiv(HW, tp))         # ragged last pixel block handled by Pallas

    kernel = functools.partial(_memory_kernel, C=C, M=M, M_pad=M_pad)

    out = pl.pallas_call(
        kernel,
        out_shape=jax.ShapeDtypeStruct((b, F, HW), stream_dtype),
        grid_spec=pltpu.PrefetchScalarGridSpec(
            num_scalar_prefetch=0,
            grid=grid,
            in_specs=[
                # feat tile  : [F, tp]  (batch dim squeezed)
                pl.BlockSpec((None, F, tp), lambda bi, pi: (bi, 0, pi)),
                # mask tile  : [C, tp]
                pl.BlockSpec((None, C, tp), lambda bi, pi: (bi, 0, pi)),
                # memory bank + pre-transposed bank: grid-invariant index maps
                # -> DMA'd once, resident across all grid steps.
                pl.BlockSpec((C * M_pad, F), lambda bi, pi: (0, 0)),
                pl.BlockSpec((F, C * M_pad), lambda bi, pi: (0, 0)),
            ],
            out_specs=pl.BlockSpec((None, F, tp), lambda bi, pi: (bi, 0, pi)),
        ),
        compiler_params=pltpu.CompilerParams(
            dimension_semantics=("parallel", "parallel"),
            vmem_limit_bytes=vmem_limit,
        ),
    )(feat, mask, mem, mem_t)

    return out.reshape(b, F, h, w)


def memory_forward_ref(input_feat, input_mask, memory_feat):
    """Pure-JAX faithful translation of the PyTorch forward for verification."""
    b, F, h, w = input_feat.shape
    C, M, _ = memory_feat.shape
    mem = memory_feat.reshape(C * M, F)                          # [C*M, F]
    mask = jnp.transpose(input_mask, (1, 0, 2, 3)).reshape(C, 1, -1)
    feat = jnp.transpose(input_feat, (1, 0, 2, 3)).reshape(F, -1)
    sim = (mem @ feat).reshape(C, M, -1)                         # [C, M, N]
    wt = jax.nn.softmax(sim, axis=1) * mask
    wt = jnp.transpose(wt.reshape(C * M, -1), (1, 0))            # [N, C*M]
    out = (wt @ mem).reshape(b, h, w, F)
    return jnp.transpose(out, (0, 3, 1, 2))


if __name__ == "__main__":
    def make_inputs(key, b, F, h, w, C, M):
        k_feat, k_mask, k_mem = jax.random.split(key, 3)
        feat = jax.random.normal(k_feat, (b, F, h, w), dtype=jnp.float32)
        # soft category mask, like a softmaxed segmentation map
        mask = jax.nn.softmax(
            jax.random.normal(k_mask, (b, C, h, w), dtype=jnp.float32), axis=1)
        # nn.init.uniform -> U(0, 1)
        mem = jax.random.uniform(k_mem, (C, M, F), dtype=jnp.float32)
        return feat, mask, mem

    k1, k2 = jax.random.split(jax.random.PRNGKey(0))

    # 1) default f32 path, aligned shapes.
    feat, mask, mem = make_inputs(k1, b=2, F=32, h=16, w=16, C=4, M=8)
    out = jax.block_until_ready(memory_forward(feat, mask, mem))
    ref = memory_forward_ref(feat, mask, mem)
    assert out.shape == feat.shape
    assert jnp.allclose(out, ref, atol=1e-4, rtol=1e-4), "f32 mismatch vs reference"

    # 2) bf16-streamed path (halves dominant HBM bytes); compare against the
    #    f32 reference evaluated on bf16-rounded inputs with a loose tolerance.
    out_bf16 = jax.block_until_ready(
        memory_forward(feat, mask, mem, stream_dtype=jnp.bfloat16))
    feat_b = feat.astype(jnp.bfloat16).astype(jnp.float32)
    mem_b = mem.astype(jnp.bfloat16).astype(jnp.float32)
    ref_b = memory_forward_ref(feat_b, mask, mem_b)
    assert out_bf16.dtype == jnp.bfloat16
    assert jnp.allclose(out_bf16.astype(jnp.float32), ref_b, atol=3e-2, rtol=3e-2), \
        "bf16 mismatch vs reference"

    # 3) f32 path with M % 8 != 0 (padded bank), ragged pixel tile, batch == 1.
    feat3, mask3, mem3 = make_inputs(k2, b=1, F=16, h=16, w=15, C=3, M=5)
    out3 = jax.block_until_ready(memory_forward(feat3, mask3, mem3))
    ref3 = memory_forward_ref(feat3, mask3, mem3)
    assert jnp.allclose(out3, ref3, atol=1e-4, rtol=1e-4), "padded-M mismatch vs reference"

    print("KERNEL_OK")
</pallas_src>

<mosaic_0001>
module attributes {stable_mosaic.version = 11 : i64} {
  func.func @_memory_kernel(%arg0: i32, %arg1: i32, %arg2: memref<1x32x256xf32, #tpu.memory_space<vmem>>, %arg3: memref<1x4x256xf32, #tpu.memory_space<vmem>>, %arg4: memref<32x32xf32, #tpu.memory_space<vmem>>, %arg5: memref<32x32xf32, #tpu.memory_space<vmem>>, %arg6: memref<1x32x256xf32, #tpu.memory_space<vmem>>) attributes {dimension_semantics = [#tpu.dimension_semantics<parallel>, #tpu.dimension_semantics<parallel>], iteration_bounds = array<i64: 2, 1>, scalar_prefetch = 0 : i64, scratch_operands = 0 : i64, tpu.core_type = #tpu.core_type<tc>, window_params = [{transform_indices = @transform_0, window_bounds = array<i64: 1, 32, 256>}, {transform_indices = @transform_1, window_bounds = array<i64: 1, 4, 256>}, {pipeline_mode = #tpu.pipeline_mode<synchronous>, transform_indices = @transform_2, window_bounds = array<i64: 32, 32>}, {pipeline_mode = #tpu.pipeline_mode<synchronous>, transform_indices = @transform_3, window_bounds = array<i64: 32, 32>}, {transform_indices = @transform_4, window_bounds = array<i64: 1, 32, 256>}]} {
    %c0 = arith.constant 0 : index
    %c0_0 = arith.constant 0 : index
    %0 = vector.load %arg4[%c0, %c0_0] : memref<32x32xf32, #tpu.memory_space<vmem>>, vector<32x32xf32>
    %c0_1 = arith.constant 0 : index
    %c0_2 = arith.constant 0 : index
    %c0_3 = arith.constant 0 : index
    %1 = vector.load %arg2[%c0_1, %c0_2, %c0_3] : memref<1x32x256xf32, #tpu.memory_space<vmem>>, vector<1x32x256xf32>
    %2 = vector.shape_cast %1 : vector<1x32x256xf32> to vector<32x256xf32>
    %cst = arith.constant dense<0.000000e+00> : vector<32x256xf32>
    %3 = tpu.matmul %0, %2, %cst {dimension_numbers = #tpu.dot_dimension_numbers<[1], [0], [0], [1], [0, 0, 1, 1], [], []>} : vector<32x32xf32>, vector<32x256xf32>, vector<32x256xf32> -> vector<32x256xf32>
    %4 = vector.shape_cast %3 : vector<32x256xf32> to vector<4x8x256xf32>
    %cst_4 = arith.constant dense<0xFF800000> : vector<4x256xf32>
    %5 = vector.multi_reduction <maximumf>, %4, %cst_4 [1] : vector<4x8x256xf32> to vector<4x256xf32>
    %6 = vector.shape_cast %5 : vector<4x256xf32> to vector<4x1x256xf32>
    %7 = vector.broadcast %6 : vector<4x1x256xf32> to vector<4x8x256xf32>
    %8 = arith.subf %4, %7 : vector<4x8x256xf32>
    %9 = math.exp %8 : vector<4x8x256xf32>
    %cst_5 = arith.constant dense<0.000000e+00> : vector<4x256xf32>
    %10 = vector.multi_reduction <add>, %9, %cst_5 [1] : vector<4x8x256xf32> to vector<4x256xf32>
    %11 = vector.shape_cast %10 : vector<4x256xf32> to vector<4x1x256xf32>
    %12 = tpu.reciprocal %11 {approx = true} : vector<4x1x256xf32> -> vector<4x1x256xf32>
    %13 = arith.mulf %11, %12 : vector<4x1x256xf32>
    %cst_6 = arith.constant 2.000000e+00 : f32
    %14 = vector.broadcast %cst_6 : f32 to vector<4x1x256xf32>
    %15 = arith.subf %14, %13 : vector<4x1x256xf32>
    %16 = arith.mulf %12, %15 : vector<4x1x256xf32>
    %c0_7 = arith.constant 0 : index
    %c0_8 = arith.constant 0 : index
    %c0_9 = arith.constant 0 : index
    %17 = vector.load %arg3[%c0_7, %c0_8, %c0_9] : memref<1x4x256xf32, #tpu.memory_space<vmem>>, vector<1x4x256xf32>
    %18 = vector.shape_cast %17 : vector<1x4x256xf32> to vector<4x256xf32>
    %19 = vector.shape_cast %18 : vector<4x256xf32> to vector<4x1x256xf32>
    %20 = arith.mulf %16, %19 : vector<4x1x256xf32>
    %21 = vector.broadcast %20 : vector<4x1x256xf32> to vector<4x8x256xf32>
    %22 = arith.mulf %9, %21 : vector<4x8x256xf32>
    %23 = vector.shape_cast %22 : vector<4x8x256xf32> to vector<32x256xf32>
    %c0_10 = arith.constant 0 : index
    %c0_11 = arith.constant 0 : index
    %24 = vector.load %arg5[%c0_10, %c0_11] : memref<32x32xf32, #tpu.memory_space<vmem>>, vector<32x32xf32>
    %cst_12 = arith.constant dense<0.000000e+00> : vector<32x256xf32>
    %25 = tpu.matmul %24, %23, %cst_12 {dimension_numbers = #tpu.dot_dimension_numbers<[1], [0], [0], [1], [0, 0, 1, 1], [], []>} : vector<32x32xf32>, vector<32x256xf32>, vector<32x256xf32> -> vector<32x256xf32>
    %c0_13 = arith.constant 0 : index
    %c0_14 = arith.constant 0 : index
    %c0_15 = arith.constant 0 : index
    %26 = vector.load %arg6[%c0_13, %c0_14, %c0_15] : memref<1x32x256xf32, #tpu.memory_space<vmem>>, vector<1x32x256xf32>
    %27 = vector.shape_cast %26 : vector<1x32x256xf32> to vector<32x256xf32>
    %28 = vector.shape_cast %25 : vector<32x256xf32> to vector<1x32x256xf32>
    tpu.vector_store %arg6[%c0_13, %c0_14, %c0_15], %28 {strides = array<i32>} : memref<1x32x256xf32, #tpu.memory_space<vmem>>, vector<1x32x256xf32>,
    return
  }
  func.func @transform_0(%arg0: i32, %arg1: i32) -> (i32, i32, i32) {
    %c0_i32 = arith.constant 0 : i32
    %c0_i32_0 = arith.constant 0 : i32
    return %arg0, %c0_i32, %arg1 : i32, i32, i32
  }
  func.func @transform_1(%arg0: i32, %arg1: i32) -> (i32, i32, i32) {
    %c0_i32 = arith.constant 0 : i32
    %c0_i32_0 = arith.constant 0 : i32
    return %arg0, %c0_i32, %arg1 : i32, i32, i32
  }
  func.func @transform_2(%arg0: i32, %arg1: i32) -> (i32, i32) {
    %c0_i32 = arith.constant 0 : i32
    %c0_i32_0 = arith.constant 0 : i32
    %c0_i32_1 = arith.constant 0 : i32
    return %c0_i32, %c0_i32_0 : i32, i32
  }
  func.func @transform_3(%arg0: i32, %arg1: i32) -> (i32, i32) {
    %c0_i32 = arith.constant 0 : i32
    %c0_i32_0 = arith.constant 0 : i32
    %c0_i32_1 = arith.constant 0 : i32
    return %c0_i32, %c0_i32_0 : i32, i32
  }
  func.func @transform_4(%arg0: i32, %arg1: i32) -> (i32, i32, i32) {
    %c0_i32 = arith.constant 0 : i32
    %c0_i32_0 = arith.constant 0 : i32
    return %arg0, %c0_i32, %arg1 : i32, i32, i32
  }
}

</mosaic_0001>

<llo_original>
// kernel: tpu_custom_call.1
$region0: #{tpu_custom_call.1}
  #allocation0 [shape = 'u32[]', space=smem, size = 0x4, offset = 0x4, fixed_abs, tag = 'smem constant byte address 0x4 - core index']
  #allocation1 [shape = 'u32[144,128]{1,0:T(1,128)}', space=vmem, size = 0x12000, scoped, tag = 'internal scratch']
  %s0 = inlined_call_operand.hbm [shape: f32[2,32,256], index: 0, kind: input, shape index: {}]
  %s1 = inlined_call_operand.hbm [shape: f32[2,4,256], index: 1, kind: input, shape index: {}]
  %s2 = inlined_call_operand.hbm [shape: f32[32,32], index: 2, kind: input, shape index: {}]
  %s3 = inlined_call_operand.hbm [shape: f32[32,32], index: 3, kind: input, shape index: {}]
  %s4 = inlined_call_operand.hbm [shape: f32[2,32,256], index: 4, kind: output, shape index: {}]
  %s5 = sld [smem:[#allocation0]]
  $region65: #{tpu_custom_call.1} parent=0
    _
  %s7 = ssub.s32 1, %s5
  %s8 = scalar_select 0, %s7, %s5
  $region1: #{tpu_custom_call.1} parent=0
    #allocation2 [shape = 'u8[65536]{0}', space=vmem, size = 0x10000, scoped, tag = 'input window, operand 0']
    #allocation3 [shape = 's32[2]{0}', space=sflag, size = 0x8, scoped, tag = 'scoped memory for tpu_custom_call.1']
    #allocation4 [shape = 's32[2]{0}', space=sflag, size = 0x8, scoped, tag = 'scoped memory for tpu_custom_call.1']
    #allocation5 [shape = 'u8[8192]{0}', space=vmem, size = 0x2000, scoped, tag = 'input window, operand 1']
    #allocation6 [shape = 's32[2]{0}', space=sflag, size = 0x8, scoped, tag = 'scoped memory for tpu_custom_call.1']
    #allocation7 [shape = 'u8[16384]{0}', space=vmem, size = 0x4000, scoped, tag = 'input window, operand 2, single buffered']
    #allocation8 [shape = 'u8[16384]{0}', space=vmem, size = 0x4000, scoped, tag = 'input window, operand 3, single buffered']
    #allocation9 [shape = 's32[1]{0}', space=sflag, size = 0x4, scoped, tag = 'scoped memory for tpu_custom_call.1']
    #allocation10 [shape = 'u8[65536]{0}', space=vmem, size = 0x10000, scoped, tag = 'output window, operand 0']
    %9 = vsyncpa [#allocation3], 0
    %s10 = scalar_lea.sflag [#allocation3], 1
    %11 = vsyncpa %s10, 0
    %12 = vsyncpa [#allocation6], 0
    %s13 = scalar_lea.sflag [#allocation6], 1
    %14 = vsyncpa %s13, 0
    %15 = vsyncpa [#allocation9], 0
    %16 = vsyncpa [#allocation4], 0
    %s17 = scalar_lea.sflag [#allocation4], 1
    %18 = vsyncpa %s17, 0
    loop: start=0, step=1, limit=4
    $region2: #{tpu_custom_call.1} parent=1 // loop_pre_header
      _
    $region3: #{tpu_custom_call.1} parent=1 // loop_header
      %s20 = sphi 0, %s24
      %p21 = scmp.ge.s32.totalorder %s20, 4
      %s27 = sphi 0, %s39
      %s28 = sphi 0, %s35
      %s29 = sphi 0, %s27
      %s30 = sphi 0, %s28
      %s31 = sphi 0, %s29
      %s32 = sphi 0, %s30
      %s44 = sphi 0, %s46
      %s47 = sphi 0, %s44
      %s48 = sphi 0, %s47
      %s64 = sphi 0, %s48
      %s72 = sphi 0, %s74
      %s75 = sphi 0, %s72
      %s76 = sphi 0, %s75
      %s92 = sphi 0, %s76
      %s96 = sphi 0, %s96
      %s98 = sphi 0, %s96
      %s99 = sphi 0, %s98
      %s113 = sphi 0, %s99
      %s117 = sphi 0, %s117
      %s119 = sphi 0, %s117
      %s120 = sphi 0, %s119
      %s134 = sphi 0, %s120
      %s142 = sphi 0, %s144
      %s145 = sphi 0, %s142
      %s146 = sphi 0, %s145
      %s162 = sphi 0, %s146
    $region4: #{tpu_custom_call.1} parent=1 // loop_header_branch
      %23 = sbr.rel (%p21) target = $region8
    $region5: #{tpu_custom_call.1} parent=1 // loop_body
      %s25 = ssub.s32 %s20, 1
      %s26 = ssub.s32 %s20, 2
      %s33 = sadd.s32 1, %s28
      %p34 = scmp.ge.s32.totalorder %s33, 1
      %s35 = scalar_select %p34, 0, %s33
      %s36 = sadd.s32 1, %s27
      %s37 = scalar_select %p34, %s36, %s27
      %p38 = scmp.ge.s32.totalorder %s37, 2
      %s39 = scalar_select %p38, 0, %s37
      %s40 = ssub.s32 %s27, %s39
      %s41 = ssub.s32 %s28, %s35
      %s42 = sor.u32 %s40, %s41
      %p43 = scmp.eq.s32.totalorder %s42, 0
      %s45 = sadd.s32 %s44, 1
      %s46 = scalar_select %p43, %s44, %s45
      %p49 = pneg %p43
      %p50 = scmp.eq.s32.totalorder %s20, 1
      %p51 = por %p49, %p50
      %p52 = scmp.ne.s32.totalorder %s44, %s47
      %p53 = scmp.eq.s32.totalorder %s20, 0
      %p54 = por %p52, %p53
      %p55 = scmp.ne.s32.totalorder %s44, %s47
      %p56 = scmp.eq.s32.totalorder %s25, 1
      %p57 = por %p55, %p56
      %p58 = scmp.ne.s32.totalorder %s47, %s48
      %p59 = scmp.eq.s32.totalorder %s25, 0
      %p60 = por %p58, %p59
      %p61 = scmp.ne.s32.totalorder %s47, %s48
      %p62 = scmp.eq.s32.totalorder %s26, 1
      %p63 = por %p61, %p62
      %p65 = scmp.ne.s32.totalorder %s48, %s64
      %p66 = scmp.eq.s32.totalorder %s26, 0
      %p67 = por %p65, %p66
      %s68 = ssub.s32 %s27, %s39
      %s69 = ssub.s32 %s28, %s35
      %s70 = sor.u32 %s68, %s69
      %p71 = scmp.eq.s32.totalorder %s70, 0
      %s73 = sadd.s32 %s72, 1
      %s74 = scalar_select %p71, %s72, %s73
      %p77 = pneg %p71
      %p78 = scmp.eq.s32.totalorder %s20, 1
      %p79 = por %p77, %p78
      %p80 = scmp.ne.s32.totalorder %s72, %s75
      %p81 = scmp.eq.s32.totalorder %s20, 0
      %p82 = por %p80, %p81
      %p83 = scmp.ne.s32.totalorder %s72, %s75
      %p84 = scmp.eq.s32.totalorder %s25, 1
      %p85 = por %p83, %p84
      %p86 = scmp.ne.s32.totalorder %s75, %s76
      %p87 = scmp.eq.s32.totalorder %s25, 0
      %p88 = por %p86, %p87
      %p89 = scmp.ne.s32.totalorder %s75, %s76
      %p90 = scmp.eq.s32.totalorder %s26, 1
      %p91 = por %p89, %p90
      %p93 = scmp.ne.s32.totalorder %s76, %s92
      %p94 = scmp.eq.s32.totalorder %s26, 0
      %p95 = por %p93, %p94
      %s97 = sadd.s32 %s96, 1
      %p100 = scmp.eq.s32.totalorder %s20, 1
      %p101 = scmp.ne.s32.totalorder %s96, %s98
      %p102 = scmp.eq.s32.totalorder %s20, 0
      %p103 = por %p101, %p102
      %p104 = scmp.ne.s32.totalorder %s96, %s98
      %p105 = scmp.eq.s32.totalorder %s25, 1
      %p106 = por %p104, %p105
      %p107 = scmp.ne.s32.totalorder %s98, %s99
      %p108 = scmp.eq.s32.totalorder %s25, 0
      %p109 = por %p107, %p108
      %p110 = scmp.ne.s32.totalorder %s98, %s99
      %p111 = scmp.eq.s32.totalorder %s26, 1
      %p112 = por %p110, %p111
      %p114 = scmp.ne.s32.totalorder %s99, %s113
      %p115 = scmp.eq.s32.totalorder %s26, 0
      %p116 = por %p114, %p115
      %s118 = sadd.s32 %s117, 1
      %p121 = scmp.eq.s32.totalorder %s20, 1
      %p122 = scmp.ne.s32.totalorder %s117, %s119
      %p123 = scmp.eq.s32.totalorder %s20, 0
      %p124 = por %p122, %p123
      %p125 = scmp.ne.s32.totalorder %s117, %s119
      %p126 = scmp.eq.s32.totalorder %s25, 1
      %p127 = por %p125, %p126
      %p128 = scmp.ne.s32.totalorder %s119, %s120
      %p129 = scmp.eq.s32.totalorder %s25, 0
      %p130 = por %p128, %p129
      %p131 = scmp.ne.s32.totalorder %s119, %s120
      %p132 = scmp.eq.s32.totalorder %s26, 1
      %p133 = por %p131, %p132
      %p135 = scmp.ne.s32.totalorder %s120, %s134
      %p136 = scmp.eq.s32.totalorder %s26, 0
      %p137 = por %p135, %p136
      %s138 = ssub.s32 %s27, %s39
      %s139 = ssub.s32 %s28, %s35
      %s140 = sor.u32 %s138, %s139
      %p141 = scmp.eq.s32.totalorder %s140, 0
      %s143 = sadd.s32 %s142, 1
      %s144 = scalar_select %p141, %s142, %s143
      %p147 = pneg %p141
      %p148 = scmp.eq.s32.totalorder %s20, 1
      %p149 = por %p147, %p148
      %p150 = scmp.ne.s32.totalorder %s142, %s145
      %p151 = scmp.eq.s32.totalorder %s20, 0
      %p152 = por %p150, %p151
      %p153 = scmp.ne.s32.totalorder %s142, %s145
      %p154 = scmp.eq.s32.totalorder %s25, 1
      %p155 = por %p153, %p154
      %p156 = scmp.ne.s32.totalorder %s145, %s146
      %p157 = scmp.eq.s32.totalorder %s25, 0
      %p158 = por %p156, %p157
      %p159 = scmp.ne.s32.totalorder %s145, %s146
      %p160 = scmp.eq.s32.totalorder %s26, 1
      %p161 = por %p159, %p160
      %p163 = scmp.ne.s32.totalorder %s146, %s162
      %p164 = scmp.eq.s32.totalorder %s26, 0
      %p165 = por %p163, %p164
      %p166 = scmp.le.s32.totalorder 1, %s20
      %p167 = scmp.lt.s32.totalorder %s20, 3
      %p168 = pnand %p166, %p167
      %p169 = pneg %p168
      // Predicated region
      $region9: #{tpu_custom_call.1} parent=5 // pred_check
        _
      $region10: #{tpu_custom_call.1} parent=5 // pred_check_branch
        %171 = sbr.rel (%p168) target = $region12
      $region11: #{tpu_custom_call.1} parent=5 // pred_region
        %s172 = ssub.s32 %s20, 1
        // Predicated region
        $region13: #{tpu_custom_call.1} parent=11 // pred_check
          %p173 = pneg %p109
        $region14: #{tpu_custom_call.1} parent=11 // pred_check_branch
          %175 = sbr.rel (%p173) target = $region16
        $region15: #{tpu_custom_call.1} parent=11 // pred_region
          %s177 = ssub.s32 512, 512
          %178 = vsyncadd [#allocation6], %s177
          %s179 = sshll.u32 [#allocation7], 4
          %s180 = int_to_ptr.vmem [resolvable:$true] %s179
          %185 = dma.hbm_to_vmem [thread:$0]  %s2, 512, %s180, [#allocation6], 128, 128, 8
        $region16: #{tpu_custom_call.1} parent=11 // pred_fallthru
          _
        // Predicated region
        $region17: #{tpu_custom_call.1} parent=11 // pred_check
          %p186 = pneg %p130
        $region18: #{tpu_custom_call.1} parent=11 // pred_check_branch
          %188 = sbr.rel (%p186) target = $region20
        $region19: #{tpu_custom_call.1} parent=11 // pred_region
          %s190 = ssub.s32 512, 512
          %191 = vsyncadd [#allocation9], %s190
          %s192 = sshll.u32 [#allocation8], 4
          %s193 = int_to_ptr.vmem [resolvable:$true] %s192
          %198 = dma.hbm_to_vmem [thread:$0]  %s3, 512, %s193, [#allocation9], 128, 128, 8
        $region20: #{tpu_custom_call.1} parent=11 // pred_fallthru
          _
      $region12: #{tpu_custom_call.1} parent=5 // pred_fallthru
        _
      %p199 = scmp.lt.s32.totalorder %s20, 2
      // Predicated region
      $region21: #{tpu_custom_call.1} parent=5 // pred_check
        %p200 = pneg %p199
      $region22: #{tpu_custom_call.1} parent=5 // pred_check_branch
        %202 = sbr.rel (%p200) target = $region24
      $region23: #{tpu_custom_call.1} parent=5 // pred_region
        // Predicated region
        $region25: #{tpu_custom_call.1} parent=23 // pred_check
          %p203 = pneg %p54
        $region26: #{tpu_custom_call.1} parent=23 // pred_check_branch
          %205 = sbr.rel (%p203) target = $region28
        $region27: #{tpu_custom_call.1} parent=23 // pred_region
          %s206 = sand.u32 %s44, 1
          %s207 = scalar_lea.sflag [#allocation3], %s206
          %s208 = sand.u32 %s44, 1
          %s209 = smul.addr %s208, 64
          %s210 = scalar_lea.vmem [#allocation2], %s209
          %s211 = smul.u32 2, %s28
          %s213 = ssub.s32 1024, 1024
          %214 = vsyncadd %s207, %s213
          %s215 = smul.addr %s27, 8
          %s216 = sadd.s32 %s211, %s215
          %s217 = smul.addr %s216, 128
          %s218 = scalar_lea.hbm %s0, %s217
          %s219 = sshll.u32 %s210, 4
          %s220 = int_to_ptr.vmem [resolvable:$true] %s219
          %225 = dma.hbm_to_vmem [thread:$0]  %s218, 1024, %s220, %s207, 256, 256, 16
        $region28: #{tpu_custom_call.1} parent=23 // pred_fallthru
          _
        // Predicated region
        $region29: #{tpu_custom_call.1} parent=23 // pred_check
          %p226 = pneg %p82
        $region30: #{tpu_custom_call.1} parent=23 // pred_check_branch
          %228 = sbr.rel (%p226) target = $region32
        $region31: #{tpu_custom_call.1} parent=23 // pred_region
          %s229 = sand.u32 %s20, 1
          %s230 = scalar_lea.sflag [#allocation6], %s229
          %s231 = sand.u32 %s72, 1
          %s232 = smul.addr %s231, 8
          %s233 = scalar_lea.vmem [#allocation5], %s232
          %s234 = smul.u32 2, %s28
          %s236 = ssub.s32 128, 128
          %237 = vsyncadd %s230, %s236
          %s238 = smul.addr %s27, 2
          %s239 = sadd.s32 %s234, %s238
          %s240 = smul.addr %s239, 64
          %s241 = scalar_lea.hbm %s1, %s240
          %s243 = sshll.u32 %s233, 4
          %s244 = int_to_ptr.vmem [resolvable:$true] %s243
          %246 = dma.hbm_to_vmem [thread:$0]  %s241, 128, %s244, %s230
        $region32: #{tpu_custom_call.1} parent=23 // pred_fallthru
          _
      $region24: #{tpu_custom_call.1} parent=5 // pred_fallthru
        _
      %p247 = scmp.le.s32.totalorder 1, %s20
      %p248 = scmp.lt.s32.totalorder %s20, 3
      %p249 = pnand %p247, %p248
      %p250 = pneg %p249
      // Predicated region
      $region33: #{tpu_custom_call.1} parent=5 // pred_check
        _
      $region34: #{tpu_custom_call.1} parent=5 // pred_check_branch
        %252 = sbr.rel (%p249) target = $region36
      $region35: #{tpu_custom_call.1} parent=5 // pred_region
        %s253 = ssub.s32 %s20, 1
        %s254 = sand.u32 %s47, 1
        %s255 = scalar_lea.sflag [#allocation3], %s254
        %s256 = sand.u32 %s47, 1
        %s257 = smul.addr %s256, 64
        %s258 = scalar_lea.vmem [#allocation2], %s257
        // Predicated region
        $region37: #{tpu_custom_call.1} parent=35 // pred_check
          %p259 = pneg %p60
        $region38: #{tpu_custom_call.1} parent=35 // pred_check_branch
          %261 = sbr.rel (%p259) target = $region40
        $region39: #{tpu_custom_call.1} parent=35 // pred_region
          %262 = dma.done %s255, 1024
        $region40: #{tpu_custom_call.1} parent=35 // pred_fallthru
          _
        %s263 = sand.u32 %s25, 1
        %s264 = scalar_lea.sflag [#allocation6], %s263
        %s265 = sand.u32 %s75, 1
        %s266 = smul.addr %s265, 8
        %s267 = scalar_lea.vmem [#allocation5], %s266
        // Predicated region
        $region41: #{tpu_custom_call.1} parent=35 // pred_check
          %p268 = pneg %p88
        $region42: #{tpu_custom_call.1} parent=35 // pred_check_branch
          %270 = sbr.rel (%p268) target = $region44
        $region43: #{tpu_custom_call.1} parent=35 // pred_region
          %271 = dma.done %s264, 128
        $region44: #{tpu_custom_call.1} parent=35 // pred_fallthru
          _
        // Predicated region
        $region45: #{tpu_custom_call.1} parent=35 // pred_check
          %p272 = pneg %p109
        $region46: #{tpu_custom_call.1} parent=35 // pred_check_branch
          %274 = sbr.rel (%p272) target = $region48
        $region47: #{tpu_custom_call.1} parent=35 // pred_region
          %275 = dma.done [#allocation6], 512
        $region48: #{tpu_custom_call.1} parent=35 // pred_fallthru
          _
        // Predicated region
        $region49: #{tpu_custom_call.1} parent=35 // pred_check
          %p276 = pneg %p130
        $region50: #{tpu_custom_call.1} parent=35 // pred_check_branch
          %278 = sbr.rel (%p276) target = $region52
        $region51: #{tpu_custom_call.1} parent=35 // pred_region
          %279 = dma.done [#allocation9], 512
        $region52: #{tpu_custom_call.1} parent=35 // pred_fallthru
          _
        %s280 = sand.u32 %s47, 1
        %s281 = scalar_lea.sflag [#allocation3], %s280
        %s282 = sand.u32 %s47, 1
        %s283 = smul.addr %s282, 64
        %s284 = scalar_lea.vmem [#allocation2], %s283
        %p285 = pneg %p60
        %p286 = pneg %p57
        %s287 = sand.u32 %s25, 1
        %s288 = scalar_lea.sflag [#allocation6], %s287
        %s289 = sand.u32 %s75, 1
        %s290 = smul.addr %s289, 8
        %s291 = scalar_lea.vmem [#allocation5], %s290
        %p292 = pneg %p88
        %p293 = pneg %p85
        %p294 = pneg %p109
        %p295 = pneg %p106
        %p296 = pneg %p130
        %p297 = pneg %p127
        %p298 = pneg %p158
        %p299 = pneg %p155
        %s300 = sand.u32 %s145, 1
        %s301 = scalar_lea.sflag [#allocation4], %s300
        %s302 = sand.u32 %s145, 1
        %s303 = smul.addr %s302, 64
        %s304 = scalar_lea.vmem [#allocation10], %s303
        %s305 = smul.u32 2, %s30
        %s306 = smul.u32 2, %s30
        %s307 = smul.u32 2, %s30
        %v308 = vld [vmem:[#allocation7] sm:$0xff]
        %v309 = vld [vmem:[#allocation7 + $0x8] sm:$0xff]
        %v310 = vld [vmem:[#allocation7 + $0x10] sm:$0xff]
        %v311 = vld [vmem:[#allocation7 + $0x18] sm:$0xff]
        %v312 = vld [vmem:[%s258] sm:$0xff]
        %v313 = vld [vmem:[%s258 + $0x8] sm:$0xff]
        %v314 = vld [vmem:[%s258 + $0x10] sm:$0xff]
        %v315 = vld [vmem:[%s258 + $0x18] sm:$0xff]
        %v316 = vld [vmem:[%s258 + $0x20] sm:$0xff]
        %v317 = vld [vmem:[%s258 + $0x28] sm:$0xff]
        %v318 = vld [vmem:[%s258 + $0x30] sm:$0xff]
        %v319 = vld [vmem:[%s258 + $0x38] sm:$0xff]
        %vm320 = vcmask 261120
        %v322 = vsel %vm320, %v308, 0
        %v325 = vsel %vm320, %v309, 0
        %v328 = vsel %vm320, %v310, 0
        %v331 = vsel %vm320, %v311, 0
        %333 = vmatprep.subr.mxu0 %v313
        %334 = vmatpush1.msra.mxu0 %v312
        %335 = vmatprep.subr.mxu0 %v315
        %336 = vmatpush1.msra.mxu0 %v314
        %337 = vmatprep.subr.mxu0 %v317
        %338 = vmatpush1.msra.mxu0 %v316
        %339 = vmatprep.subr.mxu0 %v319
        %340 = vmatpush1.msra.mxu0 %v318
        %341 = vmatprep.subr.mxu0 0.0
        %342 = vmatpush1.msra.mxu0 0.0
        %343 = vmatprep.subr.mxu0 0.0
        %344 = vmatpush1.msra.mxu0 0.0
        %345 = vmatprep.subr.mxu0 0.0
        %346 = vmatpush1.msra.mxu0 0.0
        %347 = vmatprep.subr.mxu0 0.0
        %348 = vmatpush1.msra.mxu0 0.0
        %349 = vmatprep.subr.mxu0 0.0
        %350 = vmatpush1.msra.mxu0 0.0
        %351 = vmatprep.subr.mxu0 0.0
        %352 = vmatpush1.msra.mxu0 0.0
        %353 = vmatprep.subr.mxu0 0.0
        %354 = vmatpush1.msra.mxu0 0.0
        %355 = vmatprep.subr.mxu0 0.0
        %356 = vmatpush1.msra.mxu0 0.0
        %357 = vmatprep.subr.mxu0 0.0
        %358 = vmatpush1.msra.mxu0 0.0
        %359 = vmatprep.subr.mxu0 0.0
        %360 = vmatpush1.msra.mxu0 0.0
        %361 = vmatprep.subr.mxu0 0.0
        %362 = vmatpush1.msra.mxu0 0.0
        %363 = vmatprep.subr.mxu0 0.0
        %364 = vmatpush1.msra.mxu0 0.0
        %365 = vmatprep.subr.mxu0 0.0
        %366 = vmatpush1.msra.mxu0 0.0
        %367 = vmatprep.subr.mxu0 0.0
        %368 = vmatpush1.msra.mxu0 0.0
        %369 = vmatprep.subr.mxu0 0.0
        %370 = vmatpush1.msra.mxu0 0.0
        %371 = vmatprep.subr.mxu0 0.0
        %372 = vmatpush1.msra.mxu0 0.0
        %373 = vmatprep.subr.mxu0 0.0
        %374 = vmatpush1.msra.mxu0 0.0
        %375 = vmatprep.subr.mxu0 0.0
        %376 = vmatpush1.msra.mxu0 0.0
        %377 = vmatprep.subr.mxu0 0.0
        %378 = vmatpush1.msra.mxu0 0.0
        %379 = vmatprep.subr.mxu0 0.0
        %380 = vmatpush1.msra.mxu0 0.0
        %381 = vmatprep.subr.mxu0 0.0
        %382 = vmatpush1.msra.mxu0 0.0
        %383 = vmatprep.subr.mxu0 0.0
        %384 = vmatpush1.msra.mxu0 0.0
        %385 = vmatprep.subr.mxu0 0.0
        %386 = vmatpush1.msra.mxu0 0.0
        %387 = vmatprep.subr.mxu0 0.0
        %388 = vmatpush1.msra.mxu0 0.0
        %389 = vmatprep.subr.mxu0 0.0
        %390 = vmatpush1.msra.mxu0 0.0
        %391 = vmatprep.subr.mxu0 0.0
        %392 = vmatpush1.msra.mxu0 0.0
        %393 = vmatprep.subr.mxu0 0.0
        %394 = vmatpush1.msra.mxu0 0.0
        %395 = vmatprep.subr.mxu0 0.0
        %396 = vmatpush1.msra.mxu0 0.0
        %397 = vmatprep.mubr.f32.mxu0 0.0
        %398 = vmatmul.mubr.f32.gmra.mrb[0].mxu0 %v322
        %v399 = vpop.f32.mrb[0].mxu0
        %v400 = vadd.f32 0.0, %v399
        %v401 = vpop.f32.mrb[0].mxu0
        %v402 = vadd.f32 0.0, %v401
        %403 = vmatprep.mubr.f32.mxu0 0.0
        %404 = vmatmul.mubr.f32.gmra.mrb[0].mxu0 %v325
        %v405 = vpop.f32.mrb[0].mxu0
        %v406 = vadd.f32 0.0, %v405
        %v407 = vpop.f32.mrb[0].mxu0
        %v408 = vadd.f32 0.0, %v407
        %409 = vmatprep.mubr.f32.mxu0 0.0
        %410 = vmatmul.mubr.f32.gmra.mrb[0].mxu0 %v328
        %v411 = vpop.f32.mrb[0].mxu0
        %v412 = vadd.f32 0.0, %v411
        %v413 = vpop.f32.mrb[0].mxu0
        %v414 = vadd.f32 0.0, %v413
        %415 = vmatprep.mubr.f32.mxu0 0.0
        %416 = vmatmul.mubr.f32.gmra.mrb[0].mxu0 %v331
        %v417 = vpop.f32.mrb[0].mxu0
        %v418 = vadd.f32 0.0, %v417
        %v419 = vpop.f32.mrb[0].mxu0
        %v420 = vadd.f32 0.0, %v419
        %421 = vdwg.mxu0
        %v422 = vrot.slane %v400, 4
        %v423 = vmax.f32 %v400, %v422
        %v424 = vrot.slane %v423, 2
        %v425 = vmax.f32 %v423, %v424
        %v426 = vrot.slane %v425, 1
        %v427 = vmax.f32 %v425, %v426
        %v428 = vrot.slane %v402, 4
        %v429 = vmax.f32 %v402, %v428
        %v430 = vrot.slane %v429, 2
        %v431 = vmax.f32 %v429, %v430
        %v432 = vrot.slane %v431, 1
        %v433 = vmax.f32 %v431, %v432
        %v434 = vrot.slane %v406, 4
        %v435 = vmax.f32 %v406, %v434
        %v436 = vrot.slane %v435, 2
        %v437 = vmax.f32 %v435, %v436
        %v438 = vrot.slane %v437, 1
        %v439 = vmax.f32 %v437, %v438
        %v440 = vrot.slane %v408, 4
        %v441 = vmax.f32 %v408, %v440
        %v442 = vrot.slane %v441, 2
        %v443 = vmax.f32 %v441, %v442
        %v444 = vrot.slane %v443, 1
        %v445 = vmax.f32 %v443, %v444
        %v446 = vrot.slane %v412, 4
        %v447 = vmax.f32 %v412, %v446
        %v448 = vrot.slane %v447, 2
        %v449 = vmax.f32 %v447, %v448
        %v450 = vrot.slane %v449, 1
        %v451 = vmax.f32 %v449, %v450
        %v452 = vrot.slane %v414, 4
        %v453 = vmax.f32 %v414, %v452
        %v454 = vrot.slane %v453, 2
        %v455 = vmax.f32 %v453, %v454
        %v456 = vrot.slane %v455, 1
        %v457 = vmax.f32 %v455, %v456
        %v458 = vrot.slane %v418, 4
        %v459 = vmax.f32 %v418, %v458
        %v460 = vrot.slane %v459, 2
        %v461 = vmax.f32 %v459, %v460
        %v462 = vrot.slane %v461, 1
        %v463 = vmax.f32 %v461, %v462
        %v464 = vrot.slane %v420, 4
        %v465 = vmax.f32 %v420, %v464
        %v466 = vrot.slane %v465, 2
        %v467 = vmax.f32 %v465, %v466
        %v468 = vrot.slane %v467, 1
        %v469 = vmax.f32 %v467, %v468
        %v470 = vsub.f32 %v400, %v427
        %v471 = vsub.f32 %v402, %v433
        %v472 = vsub.f32 %v406, %v439
        %v473 = vsub.f32 %v408, %v445
        %v474 = vsub.f32 %v412, %v451
        %v475 = vsub.f32 %v414, %v457
        %v476 = vsub.f32 %v418, %v463
        %v477 = vsub.f32 %v420, %v469
        %v478 = vmul.f32 %v470, 1.442695
        %v479 = vpow.pop %v478
        %v480 = vmul.f32 %v471, 1.442695
        %v481 = vpow.pop %v480
        %v482 = vmul.f32 %v472, 1.442695
        %v483 = vpow.pop %v482
        %v484 = vmul.f32 %v473, 1.442695
        %v485 = vpow.pop %v484
        %v486 = vmul.f32 %v474, 1.442695
        %v487 = vpow.pop %v486
        %v488 = vmul.f32 %v475, 1.442695
        %v489 = vpow.pop %v488
        %v490 = vmul.f32 %v476, 1.442695
        %v491 = vpow.pop %v490
        %v492 = vmul.f32 %v477, 1.442695
        %v493 = vpow.pop %v492
        %v494 = vrot.slane %v479, 4
        %v495 = vadd.f32 %v479, %v494
        %v496 = vrot.slane %v495, 2
        %v497 = vadd.f32 %v495, %v496
        %v498 = vrot.slane %v497, 1
        %v499 = vadd.f32 %v497, %v498
        %v500 = vrot.slane %v481, 4
        %v501 = vadd.f32 %v481, %v500
        %v502 = vrot.slane %v501, 2
        %v503 = vadd.f32 %v501, %v502
        %v504 = vrot.slane %v503, 1
        %v505 = vadd.f32 %v503, %v504
        %v506 = vrot.slane %v483, 4
        %v507 = vadd.f32 %v483, %v506
        %v508 = vrot.slane %v507, 2
        %v509 = vadd.f32 %v507, %v508
        %v510 = vrot.slane %v509, 1
        %v511 = vadd.f32 %v509, %v510
        %v512 = vrot.slane %v485, 4
        %v513 = vadd.f32 %v485, %v512
        %v514 = vrot.slane %v513, 2
        %v515 = vadd.f32 %v513, %v514
        %v516 = vrot.slane %v515, 1
        %v517 = vadd.f32 %v515, %v516
        %v518 = vrot.slane %v487, 4
        %v519 = vadd.f32 %v487, %v518
        %v520 = vrot.slane %v519, 2
        %v521 = vadd.f32 %v519, %v520
        %v522 = vrot.slane %v521, 1
        %v523 = vadd.f32 %v521, %v522
        %v524 = vrot.slane %v489, 4
        %v525 = vadd.f32 %v489, %v524
        %v526 = vrot.slane %v525, 2
        %v527 = vadd.f32 %v525, %v526
        %v528 = vrot.slane %v527, 1
        %v529 = vadd.f32 %v527, %v528
        %v530 = vrot.slane %v491, 4
        %v531 = vadd.f32 %v491, %v530
        %v532 = vrot.slane %v531, 2
        %v533 = vadd.f32 %v531, %v532
        %v534 = vrot.slane %v533, 1
        %v535 = vadd.f32 %v533, %v534
        %v536 = vrot.slane %v493, 4
        %v537 = vadd.f32 %v493, %v536
        %v538 = vrot.slane %v537, 2
        %v539 = vadd.f32 %v537, %v538
        %v540 = vrot.slane %v539, 1
        %v541 = vadd.f32 %v539, %v540
        %v542 = vrcp.pop %v499
        %v543 = vrcp.pop %v505
        %v544 = vrcp.pop %v511
        %v545 = vrcp.pop %v517
        %v546 = vrcp.pop %v523
        %v547 = vrcp.pop %v529
        %v548 = vrcp.pop %v535
        %v549 = vrcp.pop %v541
        %v550 = vmul.f32 %v499, %v542
        %v551 = vmul.f32 %v505, %v543
        %v552 = vmul.f32 %v511, %v544
        %v553 = vmul.f32 %v517, %v545
        %v554 = vmul.f32 %v523, %v546
        %v555 = vmul.f32 %v529, %v547
        %v556 = vmul.f32 %v535, %v548
        %v557 = vmul.f32 %v541, %v549
        %v558 = vsub.f32 2.0, %v550
        %v559 = vsub.f32 2.0, %v551
        %v560 = vsub.f32 2.0, %v552
        %v561 = vsub.f32 2.0, %v553
        %v562 = vsub.f32 2.0, %v554
        %v563 = vsub.f32 2.0, %v555
        %v564 = vsub.f32 2.0, %v556
        %v565 = vsub.f32 2.0, %v557
        %v566 = vmul.f32 %v542, %v558
        %v567 = vmul.f32 %v543, %v559
        %v568 = vmul.f32 %v544, %v560
        %v569 = vmul.f32 %v545, %v561
        %v570 = vmul.f32 %v546, %v562
        %v571 = vmul.f32 %v547, %v563
        %v572 = vmul.f32 %v548, %v564
        %v573 = vmul.f32 %v549, %v565
        %v574 = vld [vmem:[%s267] sm:$0xff]
        %v577 = vunpack.c.l.s4 1966171168
        %v578 = vunpack.c.0.s8 %v577
        %v579 = vlaneseq
        %v580 = vshrl.u32 %v579, 7
        %v581 = vsub.s32 %v578, %v580
        %v582 = vrot.slane %v574, %v581
        %v583 = vcombine.high %v582, %v582
        %v585 = vunpack.c.l.s4 1966171168
        %v586 = vunpack.c.0.s8 %v585
        %v587 = vlaneseq
        %v588 = vshrl.u32 %v587, 7
        %v589 = vsub.s32 %v586, %v588
        %v590 = vrot.slane %v582, %v589
        %v592 = vunpack.c.l.s4 1966171168
        %v593 = vunpack.c.0.s8 %v592
        %v594 = vlaneseq
        %v595 = vshrl.u32 %v594, 7
        %v596 = vsub.s32 %v593, %v595
        %v597 = vrot.slane %v583, %v596
        %v598 = vcombine.high %v590, %v590
        %v599 = vcombine.high %v597, %v597
        %v600 = vlaneseq
        %v601 = vshrl.u32 %v600, 7
        %v602 = vsub.s32 0, %v601
        %v603 = vrot.slane %v590, %v602
        %v604 = vlaneseq
        %v605 = vshrl.u32 %v604, 7
        %v606 = vsub.s32 1, %v605
        %v607 = vrot.slane %v590, %v606
        %v608 = vlaneseq
        %v609 = vshrl.u32 %v608, 7
        %v610 = vsub.s32 0, %v609
        %v611 = vrot.slane %v597, %v610
        %v612 = vlaneseq
        %v613 = vshrl.u32 %v612, 7
        %v614 = vsub.s32 1, %v613
        %v615 = vrot.slane %v597, %v614
        %v616 = vlaneseq
        %v617 = vshrl.u32 %v616, 7
        %v618 = vsub.s32 0, %v617
        %v619 = vrot.slane %v598, %v618
        %v620 = vlaneseq
        %v621 = vshrl.u32 %v620, 7
        %v622 = vsub.s32 1, %v621
        %v623 = vrot.slane %v598, %v622
        %v624 = vlaneseq
        %v625 = vshrl.u32 %v624, 7
        %v626 = vsub.s32 0, %v625
        %v627 = vrot.slane %v599, %v626
        %v628 = vlaneseq
        %v629 = vshrl.u32 %v628, 7
        %v630 = vsub.s32 1, %v629
        %v631 = vrot.slane %v599, %v630
        %v640 = vmul.f32 %v566, %v603
        %v641 = vmul.f32 %v567, %v607
        %v642 = vmul.f32 %v568, %v611
        %v643 = vmul.f32 %v569, %v615
        %v644 = vmul.f32 %v570, %v619
        %v645 = vmul.f32 %v571, %v623
        %v646 = vmul.f32 %v572, %v627
        %v647 = vmul.f32 %v573, %v631
        %v648 = vlaneseq
        %v649 = vshrl.u32 %v648, 7
        %v650 = vsub.s32 0, %v649
        %v651 = vrot.slane %v640, %v650
        %v652 = vlaneseq
        %v653 = vshrl.u32 %v652, 7
        %v654 = vsub.s32 0, %v653
        %v655 = vrot.slane %v641, %v654
        %v656 = vlaneseq
        %v657 = vshrl.u32 %v656, 7
        %v658 = vsub.s32 0, %v657
        %v659 = vrot.slane %v642, %v658
        %v660 = vlaneseq
        %v661 = vshrl.u32 %v660, 7
        %v662 = vsub.s32 0, %v661
        %v663 = vrot.slane %v643, %v662
        %v664 = vlaneseq
        %v665 = vshrl.u32 %v664, 7
        %v666 = vsub.s32 0, %v665
        %v667 = vrot.slane %v644, %v666
        %v668 = vlaneseq
        %v669 = vshrl.u32 %v668, 7
        %v670 = vsub.s32 0, %v669
        %v671 = vrot.slane %v645, %v670
        %v672 = vlaneseq
        %v673 = vshrl.u32 %v672, 7
        %v674 = vsub.s32 0, %v673
        %v675 = vrot.slane %v646, %v674
        %v676 = vlaneseq
        %v677 = vshrl.u32 %v676, 7
        %v678 = vsub.s32 0, %v677
        %v679 = vrot.slane %v647, %v678
        %v680 = vmul.f32 %v479, %v651
        %v681 = vmul.f32 %v481, %v655
        %v682 = vmul.f32 %v483, %v659
        %v683 = vmul.f32 %v485, %v663
        %v684 = vmul.f32 %v487, %v667
        %v685 = vmul.f32 %v489, %v671
        %v686 = vmul.f32 %v491, %v675
        %v687 = vmul.f32 %v493, %v679
        %v688 = vld [vmem:[#allocation8] sm:$0xff]
        %v689 = vld [vmem:[#allocation8 + $0x8] sm:$0xff]
        %v690 = vld [vmem:[#allocation8 + $0x10] sm:$0xff]
        %v691 = vld [vmem:[#allocation8 + $0x18] sm:$0xff]
        %v693 = vsel %vm320, %v688, 0
        %v696 = vsel %vm320, %v689, 0
        %v699 = vsel %vm320, %v690, 0
        %v702 = vsel %vm320, %v691, 0
        %704 = vmatprep.subr.mxu0 %v681
        %705 = vmatpush1.msra.mxu0 %v680
        %706 = vmatprep.subr.mxu0 %v683
        %707 = vmatpush1.msra.mxu0 %v682
        %708 = vmatprep.subr.mxu0 %v685
        %709 = vmatpush1.msra.mxu0 %v684
        %710 = vmatprep.subr.mxu0 %v687
        %711 = vmatpush1.msra.mxu0 %v686
        %712 = vmatprep.subr.mxu0 0.0
        %713 = vmatpush1.msra.mxu0 0.0
        %714 = vmatprep.subr.mxu0 0.0
        %715 = vmatpush1.msra.mxu0 0.0
        %716 = vmatprep.subr.mxu0 0.0
        %717 = vmatpush1.msra.mxu0 0.0
        %718 = vmatprep.subr.mxu0 0.0
        %719 = vmatpush1.msra.mxu0 0.0
        %720 = vmatprep.subr.mxu0 0.0
        %721 = vmatpush1.msra.mxu0 0.0
        %722 = vmatprep.subr.mxu0 0.0
        %723 = vmatpush1.msra.mxu0 0.0
        %724 = vmatprep.subr.mxu0 0.0
        %725 = vmatpush1.msra.mxu0 0.0
        %726 = vmatprep.subr.mxu0 0.0
        %727 = vmatpush1.msra.mxu0 0.0
        %728 = vmatprep.subr.mxu0 0.0
        %729 = vmatpush1.msra.mxu0 0.0
        %730 = vmatprep.subr.mxu0 0.0
        %731 = vmatpush1.msra.mxu0 0.0
        %732 = vmatprep.subr.mxu0 0.0
        %733 = vmatpush1.msra.mxu0 0.0
        %734 = vmatprep.subr.mxu0 0.0
        %735 = vmatpush1.msra.mxu0 0.0
        %736 = vmatprep.subr.mxu0 0.0
        %737 = vmatpush1.msra.mxu0 0.0
        %738 = vmatprep.subr.mxu0 0.0
        %739 = vmatpush1.msra.mxu0 0.0
        %740 = vmatprep.subr.mxu0 0.0
        %741 = vmatpush1.msra.mxu0 0.0
        %742 = vmatprep.subr.mxu0 0.0
        %743 = vmatpush1.msra.mxu0 0.0
        %744 = vmatprep.subr.mxu0 0.0
        %745 = vmatpush1.msra.mxu0 0.0
        %746 = vmatprep.subr.mxu0 0.0
        %747 = vmatpush1.msra.mxu0 0.0
        %748 = vmatprep.subr.mxu0 0.0
        %749 = vmatpush1.msra.mxu0 0.0
        %750 = vmatprep.subr.mxu0 0.0
        %751 = vmatpush1.msra.mxu0 0.0
        %752 = vmatprep.subr.mxu0 0.0
        %753 = vmatpush1.msra.mxu0 0.0
        %754 = vmatprep.subr.mxu0 0.0
        %755 = vmatpush1.msra.mxu0 0.0
        %756 = vmatprep.subr.mxu0 0.0
        %757 = vmatpush1.msra.mxu0 0.0
        %758 = vmatprep.subr.mxu0 0.0
        %759 = vmatpush1.msra.mxu0 0.0
        %760 = vmatprep.subr.mxu0 0.0
        %761 = vmatpush1.msra.mxu0 0.0
        %762 = vmatprep.subr.mxu0 0.0
        %763 = vmatpush1.msra.mxu0 0.0
        %764 = vmatprep.subr.mxu0 0.0
        %765 = vmatpush1.msra.mxu0 0.0
        %766 = vmatprep.subr.mxu0 0.0
        %767 = vmatpush1.msra.mxu0 0.0
        %768 = vmatprep.mubr.f32.mxu0 0.0
        %769 = vmatmul.mubr.f32.gmra.mrb[0].mxu0 %v693
        %v770 = vpop.f32.mrb[0].mxu0
        %v771 = vadd.f32 0.0, %v770
        %v772 = vpop.f32.mrb[0].mxu0
        %v773 = vadd.f32 0.0, %v772
        %774 = vmatprep.mubr.f32.mxu0 0.0
        %775 = vmatmul.mubr.f32.gmra.mrb[0].mxu0 %v696
        %v776 = vpop.f32.mrb[0].mxu0
        %v777 = vadd.f32 0.0, %v776
        %v778 = vpop.f32.mrb[0].mxu0
        %v779 = vadd.f32 0.0, %v778
        %780 = vmatprep.mubr.f32.mxu0 0.0
        %781 = vmatmul.mubr.f32.gmra.mrb[0].mxu0 %v699
        %v782 = vpop.f32.mrb[0].mxu0
        %v783 = vadd.f32 0.0, %v782
        %v784 = vpop.f32.mrb[0].mxu0
        %v785 = vadd.f32 0.0, %v784
        %786 = vmatprep.mubr.f32.mxu0 0.0
        %787 = vmatmul.mubr.f32.gmra.mrb[0].mxu0 %v702
        %v788 = vpop.f32.mrb[0].mxu0
        %v789 = vadd.f32 0.0, %v788
        %v790 = vpop.f32.mrb[0].mxu0
        %v791 = vadd.f32 0.0, %v790
        %792 = vdwg.mxu0
        %793 = vst [vmem:[%s304] sm:$0xff] %v771
        %794 = vst [vmem:[%s304 + $0x8] sm:$0xff] %v773
        %795 = vst [vmem:[%s304 + $0x10] sm:$0xff] %v777
        %796 = vst [vmem:[%s304 + $0x18] sm:$0xff] %v779
        %797 = vst [vmem:[%s304 + $0x20] sm:$0xff] %v783
        %798 = vst [vmem:[%s304 + $0x28] sm:$0xff] %v785
        %799 = vst [vmem:[%s304 + $0x30] sm:$0xff] %v789
        %800 = vst [vmem:[%s304 + $0x38] sm:$0xff] %v791
        %s801 = sand.u32 %s145, 1
        %s802 = scalar_lea.sflag [#allocation4], %s801
        %s803 = sand.u32 %s145, 1
        %s804 = smul.addr %s803, 64
        %s805 = scalar_lea.vmem [#allocation10], %s804
        // Predicated region
        $region53: #{tpu_custom_call.1} parent=35 // pred_check
          %p806 = pneg %p155
        $region54: #{tpu_custom_call.1} parent=35 // pred_check_branch
          %808 = sbr.rel (%p806) target = $region56
        $region55: #{tpu_custom_call.1} parent=35 // pred_region
          %s809 = smul.u32 2, %s30
          %s811 = ssub.s32 1024, 1024
          %812 = vsyncadd %s802, %s811
          %s813 = smul.addr %s29, 8
          %s814 = sadd.s32 %s809, %s813
          %s815 = smul.addr %s814, 128
          %s816 = scalar_lea.hbm %s4, %s815
          %s817 = sshll.u32 %s805, 4
          %s818 = int_to_ptr.vmem [resolvable:$true] %s817
          %823 = dma.vmem_to_hbm [thread:$0]  %s818, 1024, %s816, %s802, 256, 256, 16
        $region56: #{tpu_custom_call.1} parent=35 // pred_fallthru
          _
      $region36: #{tpu_custom_call.1} parent=5 // pred_fallthru
        _
      %p824 = scmp.le.s32.totalorder 2, %s20
      // Predicated region
      $region57: #{tpu_custom_call.1} parent=5 // pred_check
        %p825 = pneg %p824
      $region58: #{tpu_custom_call.1} parent=5 // pred_check_branch
        %827 = sbr.rel (%p825) target = $region60
      $region59: #{tpu_custom_call.1} parent=5 // pred_region
        %s828 = ssub.s32 %s20, 2
        // Predicated region
        $region61: #{tpu_custom_call.1} parent=59 // pred_check
          %p829 = pneg %p161
        $region62: #{tpu_custom_call.1} parent=59 // pred_check_branch
          %831 = sbr.rel (%p829) target = $region64
        $region63: #{tpu_custom_call.1} parent=59 // pred_region
          %s832 = sand.u32 %s146, 1
          %s833 = scalar_lea.sflag [#allocation4], %s832
          %s834 = sand.u32 %s146, 1
          %s835 = smul.addr %s834, 64
          %s836 = scalar_lea.vmem [#allocation10], %s835
          %837 = dma.done %s833, 1024
        $region64: #{tpu_custom_call.1} parent=59 // pred_fallthru
          _
      $region60: #{tpu_custom_call.1} parent=5 // pred_fallthru
        _
    $region6: #{tpu_custom_call.1} parent=1 // loop_footer
      %s24 = sadd.s32 1, %s20
    $region7: #{tpu_custom_call.1} parent=1 // loop_footer_branch
      %19 = sbr.rel target = $region3
    $region8: #{tpu_custom_call.1} parent=1 // loop_exit
      _
    %838 = vsyncpa [#allocation3], 1
    %s839 = scalar_lea.sflag [#allocation3], 1
    %840 = vsyncpa %s839, 1
    %841 = vsyncpa [#allocation6], 1
    %s842 = scalar_lea.sflag [#allocation6], 1
    %843 = vsyncpa %s842, 1
    %844 = vsyncpa [#allocation9], 1
    %845 = vsyncpa [#allocation4], 1
    %s846 = scalar_lea.sflag [#allocation4], 1
    %847 = vsyncpa %s846, 1

</llo_original>
